<compile_context>
chip_gen: v7x
topology: tpu7x:2x2x1
jax: 0.10.0
libtpu: 0.0.40
codegen_flags: <defaults>
</compile_context>

<pallas_src>
import math

import jax
import jax.numpy as jnp
from jax.experimental import pallas as pl
from jax.experimental.pallas import tpu as pltpu


_VMEM_BLOCK_BUDGET = 12 * 1024 * 1024   # input + output bytes per block
_VMEM_LIMIT_BYTES = 32 * 1024 * 1024    # <= v7x's 64 MiB physical VMEM


def _eps_greedy_kernel(scal_ref, x_ref, pi_ref):
    # scal_ref: (2,) f32 in SMEM -> [eps/A, eps/A + (1 - eps)]
    base = scal_ref[0]
    hot = scal_ref[1]
    x = x_ref[...]                                    # (TB, A), native dtype
    amax = jnp.argmax(x, axis=-1, keepdims=True)      # (TB, 1) int32 column
    col_ids = jax.lax.broadcasted_iota(jnp.int32, pi_ref.shape, 1)
    pi_ref[...] = jnp.where(col_ids == amax, hot, base)


def _round_up(n, m):
    return ((n + m - 1) // m) * m


def _choose_tb(B, A, in_itemsize):
    """Row-tile: multiple of 8, sized for HBM streaming, >=2 grid steps if B>8."""
    if B <= 8:
        return B                                  # block dim == full array dim
    row_bytes = A * (in_itemsize + 4)             # one input row + one f32 output row
    tb = _VMEM_BLOCK_BUDGET // max(row_bytes, 1)
    tb = max(8, (tb // 8) * 8)
    tb = min(tb, 4096)
    tb = min(tb, _round_up(-(-B // 2), 8))        # guarantee >= 2 steps (v7x megacore)
    return int(tb)


@jax.jit
def _eps_greedy_forward(x, scal):
    """Jitted forward: a single row-tiled pallas_call, no pad / slice passes."""
    B, A = x.shape
    TB = _choose_tb(B, A, x.dtype.itemsize)
    grid = (pl.cdiv(B, TB),)

    return pl.pallas_call(
        _eps_greedy_kernel,
        out_shape=jax.ShapeDtypeStruct((B, A), jnp.float32),
        grid=grid,
        in_specs=[
            pl.BlockSpec(memory_space=pltpu.SMEM),        # [base, hot] scalars
            pl.BlockSpec((TB, A), lambda i: (i, 0)),      # x row tile, full A width
        ],
        out_specs=pl.BlockSpec((TB, A), lambda i: (i, 0)),
        compiler_params=pltpu.CompilerParams(
            dimension_semantics=("parallel",),
            vmem_limit_bytes=_VMEM_LIMIT_BYTES,
        ),
    )(scal, x)


class EpsilonGreedyPolicyPallas:
    """JAX/Pallas port of the PyTorch EpsilonGreedyPolicy module."""

    def __init__(self, eps_start, eps_end, eps_decay):
        self.eps_start = float(eps_start)
        self.eps_end = float(eps_end)
        self.eps_decay = float(eps_decay)
        self.eps = self.current_epsilon(step=0)

    def current_epsilon(self, step):
        return self.eps_end + (self.eps_start - self.eps_end) * math.exp(
            -1.0 * step / self.eps_decay
        )

    def forward(self, x, step):
        # host-side attribute update, mirroring the PyTorch module's self.eps
        self.eps = self.current_epsilon(step)
        x = jnp.asarray(x)
        if x.dtype not in (jnp.float32, jnp.bfloat16, jnp.float16):
            x = x.astype(jnp.float32)
        A = x.shape[-1]
        base = self.eps / float(A)
        hot = base + (1.0 - self.eps)
        # (2,) device scalar array -> jit argument, so step changes never retrace.
        scal = jnp.array([base, hot], dtype=jnp.float32)
        return _eps_greedy_forward(x, scal)

    def __call__(self, x, step):
        return self.forward(x, step)


def _reference_forward(x, eps):
    """Pure-JAX reference mirroring the PyTorch forward."""
    x = jnp.asarray(x)
    B, A = x.shape
    pi = jnp.zeros((B, A), jnp.float32) + jnp.float32(eps / A)
    idx = jnp.argmax(x, axis=-1)
    pi = pi.at[jnp.arange(B), idx].add(jnp.float32(1.0 - eps))
    return pi


if __name__ == "__main__":
    key = jax.random.PRNGKey(0)
    policy = EpsilonGreedyPolicyPallas(eps_start=0.9, eps_end=0.05, eps_decay=200.0)
    step = 10
    eps_ref = policy.current_epsilon(step)

    # (1) aligned shape: 8 rows x 128 actions
    B, A = 8, 128
    x = jax.random.normal(key, (B, A), dtype=jnp.float32)
    pi = jax.block_until_ready(policy(x, step))
    ref = _reference_forward(x, eps_ref)
    assert pi.shape == (B, A) and pi.dtype == jnp.float32
    assert jnp.allclose(pi, ref, atol=1e-5), "mismatch vs reference (aligned)"
    assert jnp.allclose(pi.sum(-1), jnp.ones((B,)), atol=1e-5)

    # (2) unaligned small shape: ragged row block + sub-128 lane width, no pad/slice
    B2, A2 = 10, 5
    x2 = jax.random.normal(jax.random.PRNGKey(1), (B2, A2), dtype=jnp.float32)
    pi2 = jax.block_until_ready(policy(x2, step))
    ref2 = _reference_forward(x2, eps_ref)
    assert pi2.shape == (B2, A2)
    assert jnp.allclose(pi2, ref2, atol=1e-5), "mismatch vs reference (unaligned)"
    assert jnp.allclose(pi2.sum(-1), jnp.ones((B2,)), atol=1e-5)

    # (3) bf16 scores taken natively into the kernel (output stays f32)
    B3, A3 = 12, 33
    x3 = jax.random.normal(jax.random.PRNGKey(2), (B3, A3), dtype=jnp.bfloat16)
    pi3 = jax.block_until_ready(policy(x3, step))
    ref3 = _reference_forward(x3, eps_ref)
    assert pi3.shape == (B3, A3) and pi3.dtype == jnp.float32
    assert jnp.allclose(pi3, ref3, atol=1e-5), "mismatch vs reference (bf16)"
    assert jnp.allclose(pi3.sum(-1), jnp.ones((B3,)), atol=1e-5)

    print("KERNEL_OK")
</pallas_src>

<mosaic_0001>
module attributes {stable_mosaic.version = 11 : i64} {
  func.func @_eps_greedy_kernel(%arg0: i32, %arg1: memref<2xf32, #tpu.memory_space<smem>>, %arg2: memref<8x128xf32, #tpu.memory_space<vmem>>, %arg3: memref<8x128xf32, #tpu.memory_space<vmem>>) attributes {dimension_semantics = [#tpu.dimension_semantics<parallel>], iteration_bounds = array<i64: 1>, scalar_prefetch = 0 : i64, scratch_operands = 0 : i64, tpu.core_type = #tpu.core_type<tc>, window_params = [{transform_indices = @transform_0, window_bounds = array<i64: 2>}, {transform_indices = @transform_1, window_bounds = array<i64: 8, 128>}, {transform_indices = @transform_2, window_bounds = array<i64: 8, 128>}]} {
    %c0 = arith.constant 0 : index
    %0 = memref.load %arg1[%c0] : memref<2xf32, #tpu.memory_space<smem>>
    %c1 = arith.constant 1 : index
    %1 = memref.load %arg1[%c1] : memref<2xf32, #tpu.memory_space<smem>>
    %c0_0 = arith.constant 0 : index
    %c0_1 = arith.constant 0 : index
    %2 = vector.load %arg2[%c0_0, %c0_1] : memref<8x128xf32, #tpu.memory_space<vmem>>, vector<8x128xf32>
    %3 = tpu.reduce_index %2 {axis = 1 : i32, kind = #tpu.reduction_kind<arg_max>} : vector<8x128xf32> -> vector<8xi32>
    %4 = vector.shape_cast %3 : vector<8xi32> to vector<8x1xi32>
    %5 = tpu.iota {dimensions = array<i32: 1>} : vector<8x128xi32>
    %6 = vector.broadcast %4 : vector<8x1xi32> to vector<8x128xi32>
    %7 = arith.cmpi eq, %5, %6 : vector<8x128xi32>
    %8 = vector.broadcast %1 : f32 to vector<8x128xf32>
    %9 = vector.broadcast %0 : f32 to vector<8x128xf32>
    %10 = arith.select %7, %8, %9 : vector<8x128xi1>, vector<8x128xf32>
    %c0_2 = arith.constant 0 : index
    %c0_3 = arith.constant 0 : index
    %11 = vector.load %arg3[%c0_2, %c0_3] : memref<8x128xf32, #tpu.memory_space<vmem>>, vector<8x128xf32>
    tpu.vector_store %arg3[%c0_2, %c0_3], %10 {strides = array<i32>} : memref<8x128xf32, #tpu.memory_space<vmem>>, vector<8x128xf32>,
    return
  }
  func.func @transform_0(%arg0: i32) -> i32 {
    %c0_i32 = arith.constant 0 : i32
    %c0_i32_0 = arith.constant 0 : i32
    return %c0_i32 : i32
  }
  func.func @transform_1(%arg0: i32) -> (i32, i32) {
    %c0_i32 = arith.constant 0 : i32
    %c0_i32_0 = arith.constant 0 : i32
    return %arg0, %c0_i32 : i32, i32
  }
  func.func @transform_2(%arg0: i32) -> (i32, i32) {
    %c0_i32 = arith.constant 0 : i32
    %c0_i32_0 = arith.constant 0 : i32
    return %arg0, %c0_i32 : i32, i32
  }
}

</mosaic_0001>

<llo_original>
// kernel: _eps_greedy_forward.1
$region0: #{_eps_greedy_forward.1}
  #allocation0 [shape = 'u32[]', space=smem, size = 0x4, offset = 0x4, fixed_abs, tag = 'smem constant byte address 0x4 - core index']
  #allocation1 [shape = 'u32[144,128]{1,0:T(1,128)}', space=vmem, size = 0x12000, scoped, tag = 'internal scratch']
  %s0 = inlined_call_operand.vmem [shape: f32[2], index: 0, kind: input, shape index: {}]
  %s1 = inlined_call_operand.hbm [shape: f32[8,128], index: 1, kind: input, shape index: {}]
  %s2 = inlined_call_operand.hbm [shape: f32[8,128], index: 2, kind: output, shape index: {}]
  %s3 = sld [smem:[#allocation0]]
  $region26: #{_eps_greedy_forward.1} parent=0
    _
  %s5 = ssub.s32 1, %s3
  %s6 = scalar_select 0, %s5, %s3
  $region1: #{_eps_greedy_forward.1} parent=0
    #allocation2 [shape = 'u8[512]{0}', space=smem, size = 0x200, scoped, tag = 'input window, operand 0, single buffered']
    #allocation3 [shape = 's32[1]{0}', space=sflag, size = 0x4, scoped, tag = 'scoped memory for _eps_greedy_forward.1']
    #allocation4 [shape = 's32[1]{0}', space=sflag, size = 0x4, scoped, tag = 'scoped memory for _eps_greedy_forward.1']
    #allocation5 [shape = 's32[1]{0}', space=sflag, size = 0x4, scoped, tag = 'scoped memory for _eps_greedy_forward.1']
    #allocation6 [shape = 'u8[4096]{0}', space=vmem, size = 0x1000, scoped, tag = 'input window, operand 1, single buffered']
    #allocation7 [shape = 'u8[4096]{0}', space=vmem, size = 0x1000, scoped, tag = 'output window, operand 0, single buffered']
    %7 = vsyncpa [#allocation5], 0
    %8 = vsyncpa [#allocation3], 0
    %9 = vsyncpa [#allocation4], 0
    // Predicated region
    $region2: #{_eps_greedy_forward.1} parent=1 // pred_check
      _
    $region3: #{_eps_greedy_forward.1} parent=1 // pred_check_branch
      %11 = sbr.rel (0) target = $region5
    $region4: #{_eps_greedy_forward.1} parent=1 // pred_region
      %s13 = ssub.s32 16, 16
      %14 = vsyncadd [#allocation5], %s13
      %s16 = sshll.u32 %s0, 4
      %s17 = int_to_ptr.vmem [resolvable:$true] %s16
      %19 = dma.vmem_to_smem %s17, 16, [#allocation2], [#allocation5]
    $region5: #{_eps_greedy_forward.1} parent=1 // pred_fallthru
      _
    // Predicated region
    $region6: #{_eps_greedy_forward.1} parent=1 // pred_check
      _
    $region7: #{_eps_greedy_forward.1} parent=1 // pred_check_branch
      %21 = sbr.rel (0) target = $region9
    $region8: #{_eps_greedy_forward.1} parent=1 // pred_region
      %s23 = ssub.s32 128, 128
      %24 = vsyncadd [#allocation3], %s23
      %s26 = sshll.u32 [#allocation6], 4
      %s27 = int_to_ptr.vmem [resolvable:$true] %s26
      %29 = dma.hbm_to_vmem [thread:$0]  %s1, 128, %s27, [#allocation3]
    $region9: #{_eps_greedy_forward.1} parent=1 // pred_fallthru
      _
    // Predicated region
    $region10: #{_eps_greedy_forward.1} parent=1 // pred_check
      _
    $region11: #{_eps_greedy_forward.1} parent=1 // pred_check_branch
      %31 = sbr.rel (0) target = $region13
    $region12: #{_eps_greedy_forward.1} parent=1 // pred_region
      %32 = dma.done [#allocation5], 16
    $region13: #{_eps_greedy_forward.1} parent=1 // pred_fallthru
      _
    // Predicated region
    $region14: #{_eps_greedy_forward.1} parent=1 // pred_check
      _
    $region15: #{_eps_greedy_forward.1} parent=1 // pred_check_branch
      %34 = sbr.rel (0) target = $region17
    $region16: #{_eps_greedy_forward.1} parent=1 // pred_region
      %35 = dma.done [#allocation3], 128
    $region17: #{_eps_greedy_forward.1} parent=1 // pred_fallthru
      _
    %36 = sfence
    %s37 = sld [smem:[#allocation2]]
    %s38 = sld [smem:[#allocation2 + $0x1]]
    %v39 = vld [vmem:[#allocation6] sm:$0xff]
    %40 = vmax.index.xlane.f32.xlu0 %v39
    %v41 = vpop.xlane.xlu0 %40
    %v42 = vlaneseq
    %v43 = vand.u32 %v42, 127
    %vm44 = vcmp.eq.s32.totalorder %v43, %v41
    %v45 = vstv %s38
    %v46 = vstv %s37
    %v47 = vsel %vm44, %v45, %v46
    %48 = vst [vmem:[#allocation7] sm:$0xff] %v47
    // Predicated region
    $region18: #{_eps_greedy_forward.1} parent=1 // pred_check
      _
    $region19: #{_eps_greedy_forward.1} parent=1 // pred_check_branch
      %50 = sbr.rel (0) target = $region21
    $region20: #{_eps_greedy_forward.1} parent=1 // pred_region
      %s52 = ssub.s32 128, 128
      %53 = vsyncadd [#allocation4], %s52
      %s55 = sshll.u32 [#allocation7], 4
      %s56 = int_to_ptr.vmem [resolvable:$true] %s55
      %58 = dma.vmem_to_hbm [thread:$0]  %s56, 128, %s2, [#allocation4]
    $region21: #{_eps_greedy_forward.1} parent=1 // pred_fallthru
      _
    // Predicated region
    $region22: #{_eps_greedy_forward.1} parent=1 // pred_check
      _
    $region23: #{_eps_greedy_forward.1} parent=1 // pred_check_branch
      %60 = sbr.rel (0) target = $region25
    $region24: #{_eps_greedy_forward.1} parent=1 // pred_region
      %61 = dma.done [#allocation4], 128
    $region25: #{_eps_greedy_forward.1} parent=1 // pred_fallthru
      _
    %62 = vsyncpa [#allocation3], 1
    %63 = vsyncpa [#allocation4], 1
    %64 = vsyncpa [#allocation5], 1

</llo_original>
